<compile_context>
chip_gen: v7x
topology: tpu7x:2x2x1
jax: 0.10.0
libtpu: 0.0.40
codegen_flags: <defaults>
</compile_context>

<pallas_src>
import functools
import math

import numpy as np
import jax
import jax.numpy as jnp
from jax.experimental import pallas as pl
from jax.experimental.pallas import tpu as pltpu


def _vmem_limit(nbytes):
    # explicit scoped-VMEM budget: actual (double-buffered) tile + temp footprint
    # plus headroom, capped to stay inside v7x's 64 MiB physical VMEM.
    return int(min(64 << 20, max(int(nbytes) + (8 << 20), 16 << 20)))


# ---------------- Pallas kernel 1: node information score ------------------
def _info_score_kernel(xt_ref, nmatT_ref, out_ref, acc_ref):
    # xt_ref:    (C, TK)  bf16  -- contraction tile of x^T
    # nmatT_ref: (TK, TM) bf16  -- (contraction, output-node) tile of nmat^T
    # out_ref:   (1, TM)  f32   -- lane-dense score row for this output tile
    # acc_ref:   (C, TM)  f32   -- VMEM accumulator, persists across k steps
    k = pl.program_id(1)

    @pl.when(k == 0)
    def _():
        acc_ref[...] = jnp.zeros_like(acc_ref)

    acc_ref[...] += jnp.dot(xt_ref[...], nmatT_ref[...],
                            preferred_element_type=jnp.float32)

    @pl.when(k == pl.num_programs(1) - 1)
    def _():
        out_ref[...] = jnp.sum(jnp.abs(acc_ref[...]), axis=0, keepdims=True)


def node_information_score(nmat_t, x_t, n_valid, tile=512):
    # nmat_t: (NP, NP) bf16 -- transposed propagation matrix, zero-padded to NP
    # x_t:    (C, NP)  bf16 -- x^T, zero-padded columns beyond n_valid
    c, n_pad = x_t.shape
    tm = tk = n_pad if n_pad <= tile else tile
    num_m = n_pad // tm
    num_k = n_pad // tk
    vmem = 2 * (c * tk * 2 + tk * tm * 2 + tm * 4) + c * tm * 4
    score_slab = pl.pallas_call(
        _info_score_kernel,
        out_shape=jax.ShapeDtypeStruct((1, n_pad), jnp.float32),
        grid=(num_m, num_k),
        in_specs=[pl.BlockSpec((c, tk), lambda m, k: (0, k)),     # x^T contraction tile
                  pl.BlockSpec((tk, tm), lambda m, k: (k, m))],   # nmat^T tile
        out_specs=pl.BlockSpec((1, tm), lambda m, k: (0, m)),     # lane-dense writeback
        scratch_shapes=[pltpu.VMEM((c, tm), jnp.float32)],
        compiler_params=pltpu.CompilerParams(
            dimension_semantics=("parallel", "arbitrary"),
            vmem_limit_bytes=_vmem_limit(vmem)),
    )(x_t, nmat_t)
    return score_slab[0, :n_valid]


# ------ Pallas kernel 2: attention weights + grouped (per-row) softmax ------
def _attn_kernel(sl_ref, sr_ref, brows_ref, bcols_ref, ind_ref, out_ref,
                 *, negative_slop):
    # sl_ref: (TQ,1) f32  x[i].att_l ; sr_ref: (1,K) f32  x[j].att_r
    w = sl_ref[...] + sr_ref[...]                         # (TQ, K)
    w = jnp.maximum(w, negative_slop * w)                 # leaky_relu (0 < slope < 1)
    # within-graph mask built in-kernel from batch ids; fold "+ lamb*induced_adj"
    # and masking into a single where.
    mask = brows_ref[...] == bcols_ref[...]               # (TQ,1)==(1,K) -> (TQ,K)
    w = jnp.where(mask, w + ind_ref[...].astype(jnp.float32),
                  jnp.finfo(jnp.float32).min)
    m = jnp.max(w, axis=1, keepdims=True)
    w = jnp.exp(w - m)                                    # masked entries underflow to 0
    denom = jnp.sum(w, axis=1, keepdims=True)
    out_ref[...] = w * pl.reciprocal(denom, approx=True)


def structure_learning_attention(s_l, s_r, batch_p, ind_bf16, negative_slop, tq=None):
    k = s_l.shape[0]
    if tq is None:
        tq = 128 if k >= 4096 else 256     # smaller row tile for large K (v7x 64 MiB VMEM)
    tq = k if k <= tq else tq
    num_tiles = pl.cdiv(k, tq)
    b_rows = batch_p.astype(jnp.int32).reshape(k, 1)      # row (source) batch ids
    b_cols = batch_p.astype(jnp.int32).reshape(1, k)      # column (target) batch ids
    kernel = functools.partial(_attn_kernel, negative_slop=negative_slop)
    vmem = (2 * (tq * 4 + k * 4 + tq * 4 + k * 4 + tq * k * 2 + tq * k * 4)
            + 3 * tq * k * 4)
    # TODO(synk): exploit block-diagonal structure (PrefetchScalarGridSpec with
    # per-graph offset/size scalars) so only in-graph columns are streamed/computed.
    return pl.pallas_call(
        kernel,
        out_shape=jax.ShapeDtypeStruct((k, k), jnp.float32),
        grid=(num_tiles,),
        in_specs=[pl.BlockSpec((tq, 1), lambda i: (i, 0)),   # s_l rows of this tile
                  pl.BlockSpec((1, k), lambda i: (0, 0)),    # s_r (resident)
                  pl.BlockSpec((tq, 1), lambda i: (i, 0)),   # batch ids of row tile
                  pl.BlockSpec((1, k), lambda i: (0, 0)),    # batch ids of all columns
                  pl.BlockSpec((tq, k), lambda i: (i, 0))],  # lamb * induced adjacency (bf16)
        out_specs=pl.BlockSpec((tq, k), lambda i: (i, 0)),
        compiler_params=pltpu.CompilerParams(
            dimension_semantics=("parallel",),
            vmem_limit_bytes=_vmem_limit(vmem)),
    )(s_l, s_r, b_rows, b_cols, ind_bf16)


# ------------------------------ glue / forward ------------------------------
def hgpsl_pool(x, edge_index, edge_attr, batch, graph_sizes, att,
               ratio=0.8, lamb=1.0, negative_slop=0.2, info_tile=512):
    x = jnp.asarray(x, jnp.float32)
    n, c = x.shape
    row, col = edge_index[0], edge_index[1]
    e = int(row.shape[0])
    w = jnp.ones((e,), jnp.float32) if edge_attr is None else jnp.asarray(edge_attr, jnp.float32)

    # --- NodeInformationScore.norm: dense propagation matrix, built directly
    #     TRANSPOSED (scatter at [row, col]) and zero-padded to the kernel tile,
    #     bf16 cast fused into the build (no extra N^2 transpose/pad pass) ---
    deg = jnp.zeros((n,), jnp.float32).at[row].add(w)
    dinv = jnp.where(deg > 0, deg ** -0.5, 0.0)                    # inf -> 0
    is_self = row == col
    norm_e = jnp.where(is_self, 0.0, -dinv[row] * w * dinv[col])
    n_pad = n if n <= info_tile else (-(-n // info_tile)) * info_tile
    nmat_t = jnp.zeros((n_pad, n_pad), jnp.float32).at[row, col].add(norm_e)
    w_loop = jnp.zeros((n,), jnp.float32).at[row].add(jnp.where(is_self, w, 0.0))
    loop_norm = 1.0 - dinv * w_loop * dinv                         # expand_deg - d*w*d on self-loops
    diag = jnp.arange(n, dtype=jnp.int32)
    nmat_t = nmat_t.at[diag, diag].add(loop_norm).astype(jnp.bfloat16)
    x_t = jnp.zeros((c, n_pad), jnp.bfloat16).at[:, :n].set(x.T.astype(jnp.bfloat16))

    # --- information score (Pallas kernel 1) ---
    score = node_information_score(nmat_t, x_t, n, tile=info_tile)

    # --- topk per graph (data-dependent sort: host/JAX glue) ---
    # TODO(synk): general ragged topk would need scatter_sort; here graph sizes are static.
    perms, ks = [], []
    offset = 0
    for n_g in graph_sizes:
        k_g = int(math.ceil(ratio * n_g))
        ks.append(k_g)
        sc_g = score[offset:offset + n_g]
        order = jnp.argsort(-sc_g)                                 # descending
        perms.append(order[:k_g].astype(jnp.int32) + offset)
        offset += n_g
    perm = jnp.concatenate(perms, axis=0)
    k_total = int(perm.shape[0])

    x_p = x[perm]
    batch_p = batch[perm]

    # --- filter_adj -> dense induced adjacency over pooled nodes (bf16 stream) ---
    node_map = jnp.full((n,), -1, jnp.int32).at[perm].set(
        jnp.arange(k_total, dtype=jnp.int32))
    r2, c2 = node_map[row], node_map[col]
    valid = (r2 >= 0) & (c2 >= 0)
    induced_attr = jnp.ones((e,), jnp.float32) if edge_attr is None else jnp.asarray(edge_attr, jnp.float32)
    r2s = jnp.where(valid, r2, k_total)
    c2s = jnp.where(valid, c2, k_total)
    ind_dense = (jnp.zeros((k_total, k_total), jnp.float32).at[r2s, c2s].add(
        jnp.where(valid, induced_attr, 0.0), mode="drop") * lamb).astype(jnp.bfloat16)

    # --- per-node attention projections: two tiny XLA GEMVs (hoisted out of kernel 2) ---
    s_l = (x_p @ att[0]).reshape(k_total, 1).astype(jnp.float32)   # x[i] . att_l
    s_r = (x_p @ att[1]).reshape(1, k_total).astype(jnp.float32)   # x[j] . att_r

    # --- attention + grouped softmax (Pallas kernel 2; mask built in-kernel) ---
    attn = structure_learning_attention(s_l, s_r, batch_p, ind_dense, negative_slop)

    # --- dense_to_sparse: nonzero positions of block-diagonal pattern, row-major ---
    rows_l, cols_l, off = [], [], 0
    for k_g in ks:
        idx = np.arange(off, off + k_g)
        rr, cc = np.meshgrid(idx, idx, indexing="ij")
        rows_l.append(rr.reshape(-1))
        cols_l.append(cc.reshape(-1))
        off += k_g
    new_row = jnp.asarray(np.concatenate(rows_l), jnp.int32)
    new_col = jnp.asarray(np.concatenate(cols_l), jnp.int32)
    new_edge_index = jnp.stack([new_row, new_col], axis=0)
    new_edge_attr = attn[new_row, new_col]

    return x_p, new_edge_index, new_edge_attr, batch_p


if __name__ == "__main__":
    key = jax.random.PRNGKey(0)
    k_x, k_att = jax.random.split(key)

    in_channels = 32
    graph_sizes = [8, 8]                     # two graphs, 8 nodes each
    n = sum(graph_sizes)

    x = jax.random.normal(k_x, (n, in_channels), dtype=jnp.float32)
    batch = jnp.asarray(np.repeat(np.arange(len(graph_sizes)), graph_sizes), jnp.int32)

    # undirected ring inside each graph (no self loops); edge_index = [row; col]
    rows, cols, off = [], [], 0
    for n_g in graph_sizes:
        for i in range(n_g):
            a, b = off + i, off + (i + 1) % n_g
            rows += [a, b]
            cols += [b, a]
        off += n_g
    edge_index = jnp.asarray(np.stack([rows, cols]), jnp.int32)
    edge_attr = None

    # att: torch Parameter(1, 2*C) with xavier_uniform; stored here as (2, C)
    # where att[0] multiplies x[row] and att[1] multiplies x[col].
    fan_in, fan_out = 2 * in_channels, 1
    bound = math.sqrt(6.0 / (fan_in + fan_out))
    att = jax.random.uniform(k_att, (2, in_channels), jnp.float32, -bound, bound)

    x_p, new_edge_index, new_edge_attr, batch_p = hgpsl_pool(
        x, edge_index, edge_attr, batch, graph_sizes, att,
        ratio=0.8, lamb=1.0, negative_slop=0.2)

    jax.block_until_ready((x_p, new_edge_index, new_edge_attr, batch_p))
    print("KERNEL_OK")
</pallas_src>

<mosaic_0001>
module attributes {stable_mosaic.version = 11 : i64} {
  func.func @_info_score_kernel(%arg0: i32, %arg1: i32, %arg2: memref<32x16xbf16, #tpu.memory_space<vmem>>, %arg3: memref<16x16xbf16, #tpu.memory_space<vmem>>, %arg4: memref<1x16xf32, #tpu.memory_space<vmem>>, %arg5: memref<32x16xf32, #tpu.memory_space<vmem>>) attributes {dimension_semantics = [#tpu.dimension_semantics<parallel>, #tpu.dimension_semantics<arbitrary>], iteration_bounds = array<i64: 1, 1>, scalar_prefetch = 0 : i64, scratch_operands = 1 : i64, tpu.core_type = #tpu.core_type<tc>, window_params = [{transform_indices = @transform_0, window_bounds = array<i64: 32, 16>}, {transform_indices = @transform_1, window_bounds = array<i64: 16, 16>}, {transform_indices = @transform_2, window_bounds = array<i64: 1, 16>}]} {
    %c0_i32 = arith.constant 0 : i32
    %0 = arith.cmpi eq, %arg1, %c0_i32 : i32
    %1 = arith.extui %0 : i1 to i32
    %c0_i32_0 = arith.constant 0 : i32
    %2 = arith.cmpi ne, %1, %c0_i32_0 : i32
    scf.if %2 {
      %cst_10 = arith.constant 0.000000e+00 : f32
      %12 = vector.broadcast %cst_10 : f32 to vector<32x16xf32>
      %c0_11 = arith.constant 0 : index
      %c0_12 = arith.constant 0 : index
      %13 = vector.load %arg5[%c0_11, %c0_12] : memref<32x16xf32, #tpu.memory_space<vmem>>, vector<32x16xf32>
      tpu.vector_store %arg5[%c0_11, %c0_12], %12 {strides = array<i32>} : memref<32x16xf32, #tpu.memory_space<vmem>>, vector<32x16xf32>,
    } else {
    }
    %c0 = arith.constant 0 : index
    %c0_1 = arith.constant 0 : index
    %3 = vector.load %arg5[%c0, %c0_1] : memref<32x16xf32, #tpu.memory_space<vmem>>, vector<32x16xf32>
    %c0_2 = arith.constant 0 : index
    %c0_3 = arith.constant 0 : index
    %4 = vector.load %arg2[%c0_2, %c0_3] : memref<32x16xbf16, #tpu.memory_space<vmem>>, vector<32x16xbf16>
    %c0_4 = arith.constant 0 : index
    %c0_5 = arith.constant 0 : index
    %5 = vector.load %arg3[%c0_4, %c0_5] : memref<16x16xbf16, #tpu.memory_space<vmem>>, vector<16x16xbf16>
    %cst = arith.constant dense<0.000000e+00> : vector<32x16xf32>
    %6 = tpu.matmul %4, %5, %cst {dimension_numbers = #tpu.dot_dimension_numbers<[1], [0], [0], [1], [0, 0, 1, 1], [], []>} : vector<32x16xbf16>, vector<16x16xbf16>, vector<32x16xf32> -> vector<32x16xf32>
    %7 = arith.addf %3, %6 : vector<32x16xf32>
    %c0_6 = arith.constant 0 : index
    %c0_7 = arith.constant 0 : index
    %8 = vector.load %arg5[%c0_6, %c0_7] : memref<32x16xf32, #tpu.memory_space<vmem>>, vector<32x16xf32>
    tpu.vector_store %arg5[%c0_6, %c0_7], %7 {strides = array<i32>} : memref<32x16xf32, #tpu.memory_space<vmem>>, vector<32x16xf32>,
    %c0_i32_8 = arith.constant 0 : i32
    %9 = arith.cmpi eq, %arg1, %c0_i32_8 : i32
    %10 = arith.extui %9 : i1 to i32
    %c0_i32_9 = arith.constant 0 : i32
    %11 = arith.cmpi ne, %10, %c0_i32_9 : i32
    scf.if %11 {
      %c0_10 = arith.constant 0 : index
      %c0_11 = arith.constant 0 : index
      %12 = vector.load %arg5[%c0_10, %c0_11] : memref<32x16xf32, #tpu.memory_space<vmem>>, vector<32x16xf32>
      %13 = math.absf %12 : vector<32x16xf32>
      %cst_12 = arith.constant dense<0.000000e+00> : vector<16xf32>
      %14 = vector.multi_reduction <add>, %13, %cst_12 [0] : vector<32x16xf32> to vector<16xf32>
      %15 = vector.shape_cast %14 : vector<16xf32> to vector<1x16xf32>
      %c0_13 = arith.constant 0 : index
      %c0_14 = arith.constant 0 : index
      %16 = vector.load %arg4[%c0_13, %c0_14] : memref<1x16xf32, #tpu.memory_space<vmem>>, vector<1x16xf32>
      tpu.vector_store %arg4[%c0_13, %c0_14], %15 {strides = array<i32>} : memref<1x16xf32, #tpu.memory_space<vmem>>, vector<1x16xf32>,
    } else {
    }
    return
  }
  func.func @transform_0(%arg0: i32, %arg1: i32) -> (i32, i32) {
    %c0_i32 = arith.constant 0 : i32
    %c0_i32_0 = arith.constant 0 : i32
    return %c0_i32, %arg1 : i32, i32
  }
  func.func @transform_1(%arg0: i32, %arg1: i32) -> (i32, i32) {
    %c0_i32 = arith.constant 0 : i32
    return %arg1, %arg0 : i32, i32
  }
  func.func @transform_2(%arg0: i32, %arg1: i32) -> (i32, i32) {
    %c0_i32 = arith.constant 0 : i32
    %c0_i32_0 = arith.constant 0 : i32
    return %c0_i32, %arg0 : i32, i32
  }
}

</mosaic_0001>

<llo_original>
// kernel: tpu_custom_call.1
$region0: #{tpu_custom_call.1}
  #allocation0 [shape = 'u32[]', space=smem, size = 0x4, offset = 0x4, fixed_abs, tag = 'smem constant byte address 0x4 - core index']
  #allocation1 [shape = 'u32[144,128]{1,0:T(1,128)}', space=vmem, size = 0x12000, scoped, tag = 'internal scratch']
  #allocation2 [shape = 'f32[32,16]{1,0:T(8,128)}', space=vmem, size = 0x4000, scoped, tag = 'scratch operand']
  %s0 = inlined_call_operand.vmem [shape: bf16[32,16], index: 0, kind: input, shape index: {}]
  %s1 = inlined_call_operand.vmem [shape: bf16[16,16], index: 1, kind: input, shape index: {}]
  %s2 = inlined_call_operand.hbm [shape: f32[1,16], index: 2, kind: output, shape index: {}]
  %s3 = sld [smem:[#allocation0]]
  $region26: #{tpu_custom_call.1} parent=0
    _
  %s5 = ssub.s32 1, %s3
  %s6 = scalar_select 0, %s5, %s3
  $region1: #{tpu_custom_call.1} parent=0
    #allocation3 [shape = 'u8[512]{0}', space=vmem, size = 0x400, scoped, tag = 'output window, operand 0, single buffered']
    #allocation4 [shape = 's32[1]{0}', space=sflag, size = 0x4, scoped, tag = 'scoped memory for tpu_custom_call.1']
    %7 = vsyncpa [#allocation4], 0
    // Predicated region
    $region2: #{tpu_custom_call.1} parent=1 // pred_check
      _
    $region3: #{tpu_custom_call.1} parent=1 // pred_check_branch
      %9 = sbr.rel (0) target = $region5
    $region4: #{tpu_custom_call.1} parent=1 // pred_region
      _
    $region5: #{tpu_custom_call.1} parent=1 // pred_fallthru
      _
    // Predicated region
    $region6: #{tpu_custom_call.1} parent=1 // pred_check
      _
    $region7: #{tpu_custom_call.1} parent=1 // pred_check_branch
      %11 = sbr.rel (0) target = $region9
    $region8: #{tpu_custom_call.1} parent=1 // pred_region
      _
    $region9: #{tpu_custom_call.1} parent=1 // pred_fallthru
      _
    %p13 = scmp.eq.s32.totalorder 0, 0
    // Predicated region
    $region10: #{tpu_custom_call.1} parent=1 // pred_check
      %p14 = pneg %p13
    $region11: #{tpu_custom_call.1} parent=1 // pred_check_branch
      %16 = sbr.rel (%p14) target = $region13
    $region12: #{tpu_custom_call.1} parent=1 // pred_region
      %vm17 = vcmask 130048
      %18 = vst.msk [vmem:[#allocation2] sm:$0xff] %vm17, 0.0
      %19 = vst.msk [vmem:[#allocation2 + $0x8] sm:$0xff] %vm17, 0.0
      %20 = vst.msk [vmem:[#allocation2 + $0x10] sm:$0xff] %vm17, 0.0
      %21 = vst.msk [vmem:[#allocation2 + $0x18] sm:$0xff] %vm17, 0.0
    $region13: #{tpu_custom_call.1} parent=1 // pred_fallthru
      _
    %v22 = vld [vmem:[#allocation2] sm:$0xff]
    %v23 = vld [vmem:[#allocation2 + $0x8] sm:$0xff]
    %v24 = vld [vmem:[#allocation2 + $0x10] sm:$0xff]
    %v25 = vld [vmem:[#allocation2 + $0x18] sm:$0xff]
    %v26 = vld [vmem:[%s0] sm:$0xf]
    %v27 = vld [vmem:[%s0 + $0x4] sm:$0xf]
    %v28 = vld [vmem:[%s0 + $0x8] sm:$0xf]
    %v29 = vld [vmem:[%s0 + $0xc] sm:$0xf]
    %v30 = vld [vmem:[%s1] sm:$0xf]
    %v31 = vld [vmem:[%s1 + $0x4] sm:$0xf]
    %v36 = vunpack.c.l.b16 %v26
    %v37 = vunpack.c.l.b16 %v27
    %v38 = vunpack.c.l.b16 %v28
    %v39 = vunpack.c.l.b16 %v29
    %v40 = vpack.c.b16 %v37, %v36
    %v41 = vpack.c.b16 %v39, %v38
    %v44 = vunpack.c.l.b16 %v30
    %v45 = vunpack.c.l.b16 %v31
    %v46 = vpack.c.b16 %v45, %v44
    %vm48 = vcmask 130048
    %v50 = vsel %vm48, %v40, 0
    %v53 = vsel %vm48, %v41, 0
    %55 = vmatprep.subr.bf16.mxu0 0
    %56 = vmatpush1.bf16.msra.mxu0 %v46
    %57 = vmatprep.subr.bf16.mxu0 0
    %58 = vmatpush1.bf16.msra.mxu0 0
    %59 = vmatprep.subr.bf16.mxu0 0
    %60 = vmatpush1.bf16.msra.mxu0 0
    %61 = vmatprep.subr.bf16.mxu0 0
    %62 = vmatpush1.bf16.msra.mxu0 0
    %63 = vmatprep.subr.bf16.mxu0 0
    %64 = vmatpush1.bf16.msra.mxu0 0
    %65 = vmatprep.subr.bf16.mxu0 0
    %66 = vmatpush1.bf16.msra.mxu0 0
    %67 = vmatprep.subr.bf16.mxu0 0
    %68 = vmatpush1.bf16.msra.mxu0 0
    %69 = vmatprep.subr.bf16.mxu0 0
    %70 = vmatpush1.bf16.msra.mxu0 0
    %71 = vmatprep.subr.bf16.mxu0 0
    %72 = vmatpush1.bf16.msra.mxu0 0
    %73 = vmatprep.subr.bf16.mxu0 0
    %74 = vmatpush1.bf16.msra.mxu0 0
    %75 = vmatprep.subr.bf16.mxu0 0
    %76 = vmatpush1.bf16.msra.mxu0 0
    %77 = vmatprep.subr.bf16.mxu0 0
    %78 = vmatpush1.bf16.msra.mxu0 0
    %79 = vmatprep.subr.bf16.mxu0 0
    %80 = vmatpush1.bf16.msra.mxu0 0
    %81 = vmatprep.subr.bf16.mxu0 0
    %82 = vmatpush1.bf16.msra.mxu0 0
    %83 = vmatprep.subr.bf16.mxu0 0
    %84 = vmatpush1.bf16.msra.mxu0 0
    %85 = vmatprep.subr.bf16.mxu0 0
    %86 = vmatpush1.bf16.msra.mxu0 0
    %87 = vmatprep.mubr.bf16.mxu0 0
    %88 = vmatmul.mubr.bf16.gmra.mrb[0].mxu0 %v50
    %v89 = vpop.f32.mrb[0].mxu0
    %v90 = vadd.f32 0.0, %v89
    %v91 = vpop.f32.mrb[0].mxu0
    %v92 = vpop.f32.mrb[0].mxu0
    %v93 = vadd.f32 0.0, %v92
    %v94 = vpop.f32.mrb[0].mxu0
    %95 = vmatprep.mubr.bf16.mxu0 0
    %96 = vmatmul.mubr.bf16.gmra.mrb[0].mxu0 %v53
    %v97 = vpop.f32.mrb[0].mxu0
    %v98 = vadd.f32 0.0, %v97
    %v99 = vpop.f32.mrb[0].mxu0
    %v100 = vpop.f32.mrb[0].mxu0
    %v101 = vadd.f32 0.0, %v100
    %v102 = vpop.f32.mrb[0].mxu0
    %103 = vdwg.mxu0
    %v104 = vadd.f32 %v22, %v90
    %v105 = vadd.f32 %v23, %v93
    %v106 = vadd.f32 %v24, %v98
    %v107 = vadd.f32 %v25, %v101
    %108 = vst.msk [vmem:[#allocation2] sm:$0xff] %vm48, %v104
    %109 = vst.msk [vmem:[#allocation2 + $0x8] sm:$0xff] %vm48, %v105
    %110 = vst.msk [vmem:[#allocation2 + $0x10] sm:$0xff] %vm48, %v106
    %111 = vst.msk [vmem:[#allocation2 + $0x18] sm:$0xff] %vm48, %v107
    // Predicated region
    $region14: #{tpu_custom_call.1} parent=1 // pred_check
      %p112 = pneg %p13
    $region15: #{tpu_custom_call.1} parent=1 // pred_check_branch
      %114 = sbr.rel (%p112) target = $region17
    $region16: #{tpu_custom_call.1} parent=1 // pred_region
      %v115 = vld [vmem:[#allocation2] sm:$0xff]
      %v116 = vld [vmem:[#allocation2 + $0x8] sm:$0xff]
      %v117 = vld [vmem:[#allocation2 + $0x10] sm:$0xff]
      %v118 = vld [vmem:[#allocation2 + $0x18] sm:$0xff]
      %v119 = vand.u32 2147483647, %v115
      %v120 = vand.u32 2147483647, %v116
      %v121 = vand.u32 2147483647, %v117
      %v122 = vand.u32 2147483647, %v118
      %v123 = vsel %vm48, %v119, 0.0
      %v124 = vsel %vm48, %v120, 0.0
      %v125 = vadd.f32 %v123, %v124
      %v126 = vsel %vm48, %v121, 0.0
      %v127 = vadd.f32 %v125, %v126
      %v128 = vsel %vm48, %v122, 0.0
      %v129 = vadd.f32 %v127, %v128
      %v130 = vrot.slane %v129, 4
      %v131 = vadd.f32 %v129, %v130
      %v132 = vrot.slane %v131, 2
      %v133 = vadd.f32 %v131, %v132
      %v134 = vrot.slane %v133, 1
      %v135 = vadd.f32 %v133, %v134
      %vm136 = vcmask 122880
      %137 = vst.msk [vmem:[#allocation3] sm:$0x1] %vm136, %v135
    $region17: #{tpu_custom_call.1} parent=1 // pred_fallthru
      _
    // Predicated region
    $region18: #{tpu_custom_call.1} parent=1 // pred_check
      _
    $region19: #{tpu_custom_call.1} parent=1 // pred_check_branch
      %139 = sbr.rel (0) target = $region21
    $region20: #{tpu_custom_call.1} parent=1 // pred_region
      %s141 = ssub.s32 16, 16
      %142 = vsyncadd [#allocation4], %s141
      %s144 = sshll.u32 [#allocation3], 4
      %s145 = int_to_ptr.vmem [resolvable:$true] %s144
      %147 = dma.vmem_to_hbm [thread:$0]  %s145, 16, %s2, [#allocation4]
    $region21: #{tpu_custom_call.1} parent=1 // pred_fallthru
      _
    // Predicated region
    $region22: #{tpu_custom_call.1} parent=1 // pred_check
      _
    $region23: #{tpu_custom_call.1} parent=1 // pred_check_branch
      %149 = sbr.rel (0) target = $region25
    $region24: #{tpu_custom_call.1} parent=1 // pred_region
      %150 = dma.done [#allocation4], 16
    $region25: #{tpu_custom_call.1} parent=1 // pred_fallthru
      _
    %151 = vsyncpa [#allocation4], 1

</llo_original>
